<compile_context>
chip_gen: v6e
topology: v6e:2x2x1
jax: 0.10.0
libtpu: 0.0.40
codegen_flags: <defaults>
</compile_context>

<pallas_src>
import functools

import jax
import jax.numpy as jnp
from jax import lax
from jax.experimental import pallas as pl
from jax.experimental.pallas import tpu as pltpu


_LANES = 128
_DEFAULT_BLOCK_BYTES = 1 << 20      # ~1 MiB per input block (x2 inputs x2 bufs)
_AUX_PALLAS_MIN_ELEMS = 1 << 16     # aux term uses Pallas only if this big


def _bce_elementwise(x, t, from_logits):
    """Element-wise BCE matching PyTorch nn.BCE(WithLogits)Loss (f32 math)."""
    x = x.astype(jnp.float32)
    t = t.astype(jnp.float32)
    if from_logits:
        # Numerically stable BCEWithLogits: max(x,0) - x*t + log1p(exp(-|x|)).
        return jnp.maximum(x, 0.0) - x * t + jnp.log1p(jnp.exp(-jnp.abs(x)))
    # nn.BCELoss on probabilities; PyTorch clamps log() at -100.
    log_p = jnp.maximum(jnp.log(x), jnp.float32(-100.0))
    log_1mp = jnp.maximum(jnp.log1p(-x), jnp.float32(-100.0))
    return -(t * log_p + (1.0 - t) * log_1mp)


def _bce_sum_kernel(x_ref, t_ref, o_ref, *, from_logits, tile_rows, n_valid,
                    need_mask):
    """Per-tile (1,128) sublane-reduced partial sum of element-wise BCE."""
    x = x_ref[...].astype(jnp.float32)
    t = t_ref[...].astype(jnp.float32)
    bce = _bce_elementwise(x, t, from_logits)

    # Lane-dense partial: reduce sublanes only; lanes are summed in JAX after.
    o_ref[...] = jnp.sum(bce, axis=0, keepdims=True)

    if need_mask:
        # Only the final tile contains elements past the true length (grid
        # hang-off rows and/or the <128-element lane pad) -> mask just there.
        i = pl.program_id(0)

        @pl.when(i == pl.num_programs(0) - 1)
        def _():
            row = i * tile_rows + lax.broadcasted_iota(jnp.int32, bce.shape, 0)
            col = lax.broadcasted_iota(jnp.int32, bce.shape, 1)
            flat = row * _LANES + col
            masked = jnp.where(flat < n_valid, bce, 0.0)
            o_ref[...] = jnp.sum(masked, axis=0, keepdims=True)


def _choose_tile_rows(rows, itemsize, tile_rows=None,
                      block_bytes=_DEFAULT_BLOCK_BYTES):
    """Rows per block: byte-sized, multiple of 8, >=2 tiles when worthwhile."""
    if tile_rows is not None:
        tb = max(8, (int(tile_rows) // 8) * 8)     # keep the (8,128) constraint
    else:
        tb = max(8, (block_bytes // (_LANES * itemsize)) // 8 * 8)
    if rows <= tb:
        if rows >= 16:
            # Split into two tiles so a v7x megacore can shard across both TCs.
            return min(rows, ((rows + 15) // 16) * 8)
        return rows                                # single full-extent block
    return tb


def _bce_mean_pallas(values, target, *, from_logits, tile_rows=None):
    """mean(BCE(values, target)) via a lane-dense, row-tiled Pallas reduction."""
    n = int(values.size)
    x = values.reshape(-1)
    t = target.reshape(-1)

    pad = (-n) % _LANES
    if pad:
        # Minimal tail pad (<128 elements) so the stream reshapes to (rows,128).
        # TODO(synk): a fully copy-free path for n % 128 != 0 needs a manual-DMA
        # (memory_space=pl.ANY) kernel; XLA still materializes this small pad.
        x = jnp.pad(x, (0, pad))
        t = jnp.pad(t, (0, pad))
    rows = (n + pad) // _LANES
    x2 = x.reshape(rows, _LANES)
    t2 = t.reshape(rows, _LANES)

    itemsize = max(x2.dtype.itemsize, t2.dtype.itemsize)
    tb = _choose_tile_rows(rows, itemsize, tile_rows)
    num_tiles = -(-rows // tb)
    need_mask = num_tiles * tb * _LANES != n   # last tile has hang-off / pad

    kernel = functools.partial(
        _bce_sum_kernel, from_logits=from_logits, tile_rows=tb,
        n_valid=n, need_mask=need_mask)

    partials = pl.pallas_call(
        kernel,
        out_shape=jax.ShapeDtypeStruct((num_tiles, _LANES), jnp.float32),
        grid=(num_tiles,),
        in_specs=[
            pl.BlockSpec((tb, _LANES), lambda i: (i, 0)),
            pl.BlockSpec((tb, _LANES), lambda i: (i, 0)),
        ],
        out_specs=pl.BlockSpec((1, _LANES), lambda i: (i, 0)),
        compiler_params=pltpu.CompilerParams(
            dimension_semantics=("parallel",)),
    )(x2, t2)

    return jnp.sum(partials) / jnp.float32(n)


def bce_2way_strong_loss(inputs, targets, *, output_key="framewise_output",
                         weights=(1.0, 1.0), tile_rows=None):
    """Pallas equivalent of BCE2WayStrongLoss.forward.

    inputs : dict with `output_key` (framewise) and 'clipwise_output' / 'logit'
    targets: dict with 'strong' (framewise labels) and 'weak' (clipwise labels)
    """
    from_logits = "logit" in output_key
    framewise = inputs[output_key]
    strong = targets["strong"]
    clipwise = inputs["logit"] if from_logits else inputs["clipwise_output"]
    weak = targets["weak"]

    loss = _bce_mean_pallas(framewise, strong, from_logits=from_logits,
                            tile_rows=tile_rows)

    # The clipwise aux term is typically only a few KB: a dedicated pallas_call
    # would cost more in launch/pipeline-prologue overhead than its compute, so
    # evaluate it in plain JAX (fused by XLA) unless it is genuinely large.
    if int(clipwise.size) >= _AUX_PALLAS_MIN_ELEMS:
        aux_loss = _bce_mean_pallas(clipwise, weak, from_logits=from_logits,
                                    tile_rows=tile_rows)
    else:
        aux_loss = jnp.mean(_bce_elementwise(clipwise, weak, from_logits))

    return weights[0] * loss + weights[1] * aux_loss


# ----------------------------- pure-JAX reference -----------------------------

def _ref_loss(inputs, targets, output_key, weights):
    from_logits = "logit" in output_key
    clip = inputs["logit"] if from_logits else inputs["clipwise_output"]
    main = jnp.mean(_bce_elementwise(inputs[output_key], targets["strong"],
                                     from_logits))
    aux = jnp.mean(_bce_elementwise(clip, targets["weak"], from_logits))
    return weights[0] * main + weights[1] * aux


if __name__ == "__main__":
    key = jax.random.PRNGKey(0)
    k1, k2, k3, k4 = jax.random.split(key, 4)

    # Shapes implied by the module: (B, T, C) framewise, (B, C) clipwise.
    B, T, C = 2, 16, 8
    frame_logit = jax.random.normal(k1, (B, T, C), dtype=jnp.float32)
    clip_logit = jax.random.normal(k2, (B, C), dtype=jnp.float32)
    strong = (jax.random.uniform(k3, (B, T, C)) > 0.5).astype(jnp.float32)
    weak = (jax.random.uniform(k4, (B, C)) > 0.5).astype(jnp.float32)
    targets = {"strong": strong, "weak": weak}

    # 1) Default branch (nn.BCELoss on probabilities); numel % 128 == 0 path.
    inputs_prob = {"framewise_output": jax.nn.sigmoid(frame_logit),
                   "clipwise_output": jax.nn.sigmoid(clip_logit)}
    out = jax.block_until_ready(bce_2way_strong_loss(
        inputs_prob, targets, output_key="framewise_output",
        weights=(1.0, 1.0)))
    ref = jax.block_until_ready(_ref_loss(inputs_prob, targets,
                                          "framewise_output", (1.0, 1.0)))
    assert jnp.allclose(out, ref, rtol=1e-5, atol=1e-5), (out, ref)

    # 2) Logit branch (nn.BCEWithLogitsLoss), non-unit weights.
    inputs_logit = {"framewise_logit": frame_logit, "logit": clip_logit}
    out_l = jax.block_until_ready(bce_2way_strong_loss(
        inputs_logit, targets, output_key="framewise_logit",
        weights=(0.7, 0.3)))
    ref_l = jax.block_until_ready(_ref_loss(inputs_logit, targets,
                                            "framewise_logit", (0.7, 0.3)))
    assert jnp.allclose(out_l, ref_l, rtol=1e-5, atol=1e-5), (out_l, ref_l)

    # 3) Multi-tile grid + hang-off edge block + lane pad + last-tile mask
    #    (numel = 3*50*17 = 2550, not a multiple of 128; rows=20 not a multiple
    #     of the tile).  Also checks rounding of a user tile_rows=12 -> 8.
    B2, T2, C2 = 3, 50, 17
    k5, k6, k7, k8 = jax.random.split(k1, 4)
    fr2 = jax.nn.sigmoid(jax.random.normal(k5, (B2, T2, C2), dtype=jnp.float32))
    st2 = (jax.random.uniform(k6, (B2, T2, C2)) > 0.5).astype(jnp.float32)
    cl2 = jax.nn.sigmoid(jax.random.normal(k7, (B2, C2), dtype=jnp.float32))
    wk2 = (jax.random.uniform(k8, (B2, C2)) > 0.5).astype(jnp.float32)
    inputs2 = {"framewise_output": fr2, "clipwise_output": cl2}
    targets2 = {"strong": st2, "weak": wk2}
    ref2 = jax.block_until_ready(_ref_loss(inputs2, targets2,
                                           "framewise_output", (1.0, 1.0)))
    for tr in (None, 12):
        out2 = jax.block_until_ready(bce_2way_strong_loss(
            inputs2, targets2, output_key="framewise_output",
            weights=(1.0, 1.0), tile_rows=tr))
        assert jnp.allclose(out2, ref2, rtol=1e-5, atol=1e-5), (tr, out2, ref2)

    print("KERNEL_OK")
</pallas_src>

<mosaic_0001>
module attributes {stable_mosaic.version = 11 : i64} {
  func.func @_bce_sum_kernel(%arg0: i32, %arg1: memref<2x128xf32, #tpu.memory_space<vmem>>, %arg2: memref<2x128xf32, #tpu.memory_space<vmem>>, %arg3: memref<1x128xf32, #tpu.memory_space<vmem>>) attributes {dimension_semantics = [#tpu.dimension_semantics<parallel>], iteration_bounds = array<i64: 1>, scalar_prefetch = 0 : i64, scratch_operands = 0 : i64, tpu.core_type = #tpu.core_type<tc>, window_params = [{transform_indices = @transform_0, window_bounds = array<i64: 2, 128>}, {transform_indices = @transform_1, window_bounds = array<i64: 2, 128>}, {transform_indices = @transform_2, window_bounds = array<i64: 1, 128>}]} {
    %c0 = arith.constant 0 : index
    %c0_0 = arith.constant 0 : index
    %0 = vector.load %arg1[%c0, %c0_0] : memref<2x128xf32, #tpu.memory_space<vmem>>, vector<2x128xf32>
    %c0_1 = arith.constant 0 : index
    %c0_2 = arith.constant 0 : index
    %1 = vector.load %arg2[%c0_1, %c0_2] : memref<2x128xf32, #tpu.memory_space<vmem>>, vector<2x128xf32>
    %2 = math.log %0 : vector<2x128xf32>
    %cst = arith.constant -1.000000e+02 : f32
    %3 = vector.broadcast %cst : f32 to vector<2x128xf32>
    %4 = arith.maximumf %2, %3 : vector<2x128xf32>
    %cst_3 = arith.constant 0.000000e+00 : f32
    %5 = vector.broadcast %cst_3 : f32 to vector<2x128xf32>
    %6 = arith.subf %5, %0 : vector<2x128xf32>
    %7 = math.log1p %6 : vector<2x128xf32>
    %cst_4 = arith.constant -1.000000e+02 : f32
    %8 = vector.broadcast %cst_4 : f32 to vector<2x128xf32>
    %9 = arith.maximumf %7, %8 : vector<2x128xf32>
    %10 = arith.mulf %1, %4 : vector<2x128xf32>
    %cst_5 = arith.constant 1.000000e+00 : f32
    %11 = vector.broadcast %cst_5 : f32 to vector<2x128xf32>
    %12 = arith.subf %11, %1 : vector<2x128xf32>
    %13 = arith.mulf %12, %9 : vector<2x128xf32>
    %14 = arith.addf %10, %13 : vector<2x128xf32>
    %cst_6 = arith.constant 0.000000e+00 : f32
    %15 = vector.broadcast %cst_6 : f32 to vector<2x128xf32>
    %16 = arith.subf %15, %14 : vector<2x128xf32>
    %cst_7 = arith.constant dense<0.000000e+00> : vector<128xf32>
    %17 = vector.multi_reduction <add>, %16, %cst_7 [0] : vector<2x128xf32> to vector<128xf32>
    %18 = vector.shape_cast %17 : vector<128xf32> to vector<1x128xf32>
    %c0_8 = arith.constant 0 : index
    %c0_9 = arith.constant 0 : index
    %19 = vector.load %arg3[%c0_8, %c0_9] : memref<1x128xf32, #tpu.memory_space<vmem>>, vector<1x128xf32>
    tpu.vector_store %arg3[%c0_8, %c0_9], %18 {strides = array<i32>} : memref<1x128xf32, #tpu.memory_space<vmem>>, vector<1x128xf32>,
    return
  }
  func.func @transform_0(%arg0: i32) -> (i32, i32) {
    %c0_i32 = arith.constant 0 : i32
    %c0_i32_0 = arith.constant 0 : i32
    return %arg0, %c0_i32 : i32, i32
  }
  func.func @transform_1(%arg0: i32) -> (i32, i32) {
    %c0_i32 = arith.constant 0 : i32
    %c0_i32_0 = arith.constant 0 : i32
    return %arg0, %c0_i32 : i32, i32
  }
  func.func @transform_2(%arg0: i32) -> (i32, i32) {
    %c0_i32 = arith.constant 0 : i32
    %c0_i32_0 = arith.constant 0 : i32
    return %arg0, %c0_i32 : i32, i32
  }
}

</mosaic_0001>

<llo_original>
// kernel: tpu_custom_call.1
$region0: #{tpu_custom_call.1}
  #allocation0 [shape = 'u32[]', space=smem, size = 0x4, offset = 0x4, fixed_abs, tag = 'smem constant byte address 0x4 - core index']
  #allocation1 [shape = 'u32[144,128]{1,0:T(1,128)}', space=vmem, size = 0x12000, scoped, tag = 'internal scratch']
  %s0 = inlined_call_operand.hbm [shape: f32[2,128], index: 0, kind: input, shape index: {}]
  %s1 = inlined_call_operand.hbm [shape: f32[2,128], index: 1, kind: input, shape index: {}]
  %s2 = inlined_call_operand.hbm [shape: f32[1,128], index: 2, kind: output, shape index: {}]
  %s3 = sld [smem:[#allocation0]]
  $region26: #{tpu_custom_call.1} parent=0
    _
  %s5 = ssub.s32 1, %s3
  %s6 = scalar_select 0, %s5, %s3
  $region1: #{tpu_custom_call.1} parent=0
    #allocation2 [shape = 'u8[1024]{0}', space=vmem, size = 0x400, scoped, tag = 'input window, operand 0, single buffered']
    #allocation3 [shape = 's32[1]{0}', space=sflag, size = 0x4, scoped, tag = 'scoped memory for tpu_custom_call.1']
    #allocation4 [shape = 's32[1]{0}', space=sflag, size = 0x4, scoped, tag = 'scoped memory for tpu_custom_call.1']
    #allocation5 [shape = 'u8[1024]{0}', space=vmem, size = 0x400, scoped, tag = 'input window, operand 1, single buffered']
    #allocation6 [shape = 's32[1]{0}', space=sflag, size = 0x4, scoped, tag = 'scoped memory for tpu_custom_call.1']
    #allocation7 [shape = 'u8[512]{0}', space=vmem, size = 0x400, scoped, tag = 'output window, operand 0, single buffered']
    %7 = vsyncpa [#allocation3], 0
    %8 = vsyncpa [#allocation6], 0
    %9 = vsyncpa [#allocation4], 0
    // Predicated region
    $region2: #{tpu_custom_call.1} parent=1 // pred_check
      _
    $region3: #{tpu_custom_call.1} parent=1 // pred_check_branch
      %11 = sbr.rel (0) target = $region5
    $region4: #{tpu_custom_call.1} parent=1 // pred_region
      %s13 = ssub.s32 32, 32
      %14 = vsyncadd [#allocation3], %s13
      %s16 = sshll.u32 [#allocation2], 4
      %s17 = int_to_ptr.vmem [resolvable:$true] %s16
      %19 = dma.hbm_to_vmem [thread:$0]  %s0, 32, %s17, [#allocation3]
    $region5: #{tpu_custom_call.1} parent=1 // pred_fallthru
      _
    // Predicated region
    $region6: #{tpu_custom_call.1} parent=1 // pred_check
      _
    $region7: #{tpu_custom_call.1} parent=1 // pred_check_branch
      %21 = sbr.rel (0) target = $region9
    $region8: #{tpu_custom_call.1} parent=1 // pred_region
      %s23 = ssub.s32 32, 32
      %24 = vsyncadd [#allocation6], %s23
      %s26 = sshll.u32 [#allocation5], 4
      %s27 = int_to_ptr.vmem [resolvable:$true] %s26
      %29 = dma.hbm_to_vmem [thread:$0]  %s1, 32, %s27, [#allocation6]
    $region9: #{tpu_custom_call.1} parent=1 // pred_fallthru
      _
    // Predicated region
    $region10: #{tpu_custom_call.1} parent=1 // pred_check
      _
    $region11: #{tpu_custom_call.1} parent=1 // pred_check_branch
      %31 = sbr.rel (0) target = $region13
    $region12: #{tpu_custom_call.1} parent=1 // pred_region
      %32 = dma.done [#allocation3], 32
    $region13: #{tpu_custom_call.1} parent=1 // pred_fallthru
      _
    // Predicated region
    $region14: #{tpu_custom_call.1} parent=1 // pred_check
      _
    $region15: #{tpu_custom_call.1} parent=1 // pred_check_branch
      %34 = sbr.rel (0) target = $region17
    $region16: #{tpu_custom_call.1} parent=1 // pred_region
      %35 = dma.done [#allocation6], 32
    $region17: #{tpu_custom_call.1} parent=1 // pred_fallthru
      _
    %v36 = vld [vmem:[#allocation2] sm:$0x3]
    %v37 = vld [vmem:[#allocation5] sm:$0x3]
    %v38 = vlog2.pop %v36
    %v39 = vmul.f32 %v38, 0.6931472
    %v40 = vmax.f32 %v39, -100.0
    %v41 = vsub.f32 0.0, %v36
    %v42 = vadd.f32 %v41, 1.0
    %v43 = vlog2.pop %v42
    %v44 = vmul.f32 %v43, 0.6931472
    %v45 = vmul.f32 -0.5, %v41
    %v46 = vadd.f32 %v45, 1.0
    %v47 = vmul.f32 %v46, %v41
    %v48 = vand.u32 2147483647, %v41
    %vm49 = vcmp.lt.f32.partialorder %v48, 0.0004427343
    %v50 = vsel %vm49, %v47, %v44
    %v51 = vmax.f32 %v50, -100.0
    %v52 = vmul.f32 %v37, %v40
    %v53 = vsub.f32 1.0, %v37
    %v54 = vmul.f32 %v53, %v51
    %v55 = vadd.f32 %v52, %v54
    %v56 = vsub.f32 0.0, %v55
    %vm57 = vcmask 1041408
    %v58 = vsel %vm57, %v56, 0.0
    %v59 = vrot.slane %v58, 4
    %v60 = vadd.f32 %v58, %v59
    %v61 = vrot.slane %v60, 2
    %v62 = vadd.f32 %v60, %v61
    %v63 = vrot.slane %v62, 1
    %v64 = vadd.f32 %v62, %v63
    %65 = vst [vmem:[#allocation7] sm:$0x1] %v64
    // Predicated region
    $region18: #{tpu_custom_call.1} parent=1 // pred_check
      _
    $region19: #{tpu_custom_call.1} parent=1 // pred_check_branch
      %67 = sbr.rel (0) target = $region21
    $region20: #{tpu_custom_call.1} parent=1 // pred_region
      %s69 = ssub.s32 16, 16
      %70 = vsyncadd [#allocation4], %s69
      %s72 = sshll.u32 [#allocation7], 4
      %s73 = int_to_ptr.vmem [resolvable:$true] %s72
      %75 = dma.vmem_to_hbm [thread:$0]  %s73, 16, %s2, [#allocation4]
    $region21: #{tpu_custom_call.1} parent=1 // pred_fallthru
      _
    // Predicated region
    $region22: #{tpu_custom_call.1} parent=1 // pred_check
      _
    $region23: #{tpu_custom_call.1} parent=1 // pred_check_branch
      %77 = sbr.rel (0) target = $region25
    $region24: #{tpu_custom_call.1} parent=1 // pred_region
      %78 = dma.done [#allocation4], 16
    $region25: #{tpu_custom_call.1} parent=1 // pred_fallthru
      _
    %79 = vsyncpa [#allocation3], 1
    %80 = vsyncpa [#allocation6], 1
    %81 = vsyncpa [#allocation4], 1

</llo_original>
